<compile_context>
chip_gen: v7x
topology: tpu7x:2x2x1
jax: 0.10.0
libtpu: 0.0.40
codegen_flags: <defaults>
</compile_context>

<pallas_src>
import functools

import jax
import jax.numpy as jnp
from jax import lax
from jax.experimental import pallas as pl
from jax.experimental.pallas import tpu as pltpu


# ----------------------------- Pallas kernels ------------------------------

def _matmul_bn_kernel(x_ref, w_ref, sb_ref, o_ref, acc_ref, *, relu):
    """acc += x @ w (bf16 MXU, f32 acc); last K step: y = acc*scale+bias [ReLU]."""
    @pl.when(pl.program_id(2) == 0)
    def _init():
        acc_ref[...] = jnp.zeros_like(acc_ref)

    acc_ref[...] += jnp.dot(x_ref[...], w_ref[...],
                            preferred_element_type=jnp.float32)

    @pl.when(pl.program_id(2) == pl.num_programs(2) - 1)
    def _finalize():
        y = acc_ref[...] * sb_ref[0:1, :] + sb_ref[1:2, :]
        if relu:
            y = jnp.maximum(y, 0.0)
        o_ref[...] = y.astype(o_ref.dtype)


def _matmul_bn_res_relu_kernel(x_ref, w_ref, sb_ref, r_ref, o_ref, acc_ref):
    """conv2 epilogue: acc*scale + bias + residual, then final ReLU (fused)."""
    @pl.when(pl.program_id(2) == 0)
    def _init():
        acc_ref[...] = jnp.zeros_like(acc_ref)

    acc_ref[...] += jnp.dot(x_ref[...], w_ref[...],
                            preferred_element_type=jnp.float32)

    @pl.when(pl.program_id(2) == pl.num_programs(2) - 1)
    def _finalize():
        y = (acc_ref[...] * sb_ref[0:1, :] + sb_ref[1:2, :]
             + r_ref[...].astype(jnp.float32))
        o_ref[...] = jnp.maximum(y, 0.0).astype(o_ref.dtype)


# ------------------------------ tiling helpers ------------------------------

def _pick_tile(dim, target):
    """Tile for a lane/contraction axis: full dim if it fits, else the largest
    multiple-of-128 divisor <= target, else fall back to the full (untiled) dim.
    Always correct: either exact tiling or a full-extent block."""
    if dim <= target:
        return dim
    start = target - (target % 128)
    for cand in range(start, 127, -128):
        if dim % cand == 0:
            return cand
    return dim


def fused_matmul_affine(x_rows, w_mat, scale_bias, residual=None, relu=True,
                        out_dtype=jnp.float32, tm=512, tn=512, tk=1024):
    """(x_rows @ w_mat) * scale + bias [+ residual] [ReLU], tiled over (M, N, K).

    x_rows:     (M, K)      -- im2col rows / pixels (cast to bf16 here)
    w_mat:      (K, Cout)   -- conv weight as matrix (cast to bf16 here)
    scale_bias: (2, Cout)   -- folded BatchNorm [scale; bias], f32
    residual:   (M, Cout) or None
    """
    M, K = x_rows.shape
    Kw, Cout = w_mat.shape
    assert K == Kw and scale_bias.shape == (2, Cout)

    x_rows = x_rows.astype(jnp.bfloat16)
    w_mat = w_mat.astype(jnp.bfloat16)
    scale_bias = scale_bias.astype(jnp.float32)

    tm = M if M <= tm else tm              # full-extent block when small;
    tn = _pick_tile(Cout, tn)              # 512 (mult. of 256/8) otherwise,
    tk = _pick_tile(K, tk)                 # tail M rows masked by Pallas.
    grid = (pl.cdiv(M, tm), Cout // tn, K // tk)

    x_spec = pl.BlockSpec((tm, tk), lambda i, j, k: (i, k))
    w_spec = pl.BlockSpec((tk, tn), lambda i, j, k: (k, j))
    sb_spec = pl.BlockSpec((2, tn), lambda i, j, k: (0, j))
    o_spec = pl.BlockSpec((tm, tn), lambda i, j, k: (i, j))

    if residual is None:
        kernel = functools.partial(_matmul_bn_kernel, relu=relu)
        in_specs = [x_spec, w_spec, sb_spec]
        args = (x_rows, w_mat, scale_bias)
    else:
        assert residual.shape == (M, Cout)
        kernel = _matmul_bn_res_relu_kernel
        r_spec = pl.BlockSpec((tm, tn), lambda i, j, k: (i, j))
        in_specs = [x_spec, w_spec, sb_spec, r_spec]
        args = (x_rows, w_mat, scale_bias, residual.astype(jnp.bfloat16))

    return pl.pallas_call(
        kernel,
        out_shape=jax.ShapeDtypeStruct((M, Cout), out_dtype),
        grid_spec=pltpu.PrefetchScalarGridSpec(
            num_scalar_prefetch=0,
            grid=grid,
            in_specs=in_specs,
            out_specs=o_spec,
            scratch_shapes=[pltpu.VMEM((tm, tn), jnp.float32)]),
        compiler_params=pltpu.CompilerParams(
            dimension_semantics=("parallel", "parallel", "arbitrary"),
            vmem_limit_bytes=32 * 1024 * 1024),
    )(*args)


# ------------------------------- glue (JAX) ---------------------------------

def im2col_nhwc(x, ksize, stride, padding):
    """x: (N,H,W,C) -> rows (N*Ho*Wo, C*KH*KW) ordered [c][kh][kw] (kw fastest)."""
    N, H, W, C = x.shape
    xp = jnp.pad(x, ((0, 0), (padding, padding), (padding, padding), (0, 0)))
    Ho = (H + 2 * padding - ksize) // stride + 1
    Wo = (W + 2 * padding - ksize) // stride + 1
    taps = []
    for kh in range(ksize):
        for kw in range(ksize):
            taps.append(xp[:, kh:kh + stride * Ho:stride, kw:kw + stride * Wo:stride, :])
    p = jnp.stack(taps, axis=0).reshape(ksize, ksize, N, Ho, Wo, C)
    p = jnp.transpose(p, (2, 3, 4, 5, 0, 1))          # (N,Ho,Wo,C,KH,KW)
    return p.reshape(N * Ho * Wo, C * ksize * ksize), Ho, Wo


def fold_bn(conv_bias, gamma, beta, mean, var, eps=1e-5):
    """Fold conv bias + inference BatchNorm into a single (2, Cout) [scale; bias]."""
    scale = gamma / jnp.sqrt(var + eps)
    bias = (conv_bias - mean) * scale + beta
    return jnp.stack([scale, bias], axis=0).astype(jnp.float32)


def basic_block_forward(x_nchw, params, ksize, stride, padding):
    # NCHW -> NHWC; bf16 operands for the MXU (f32 accumulation stays in-kernel).
    x = jnp.transpose(x_nchw, (0, 2, 3, 1)).astype(jnp.bfloat16)
    N, H, W, Cin = x.shape
    Cout = params["conv1_w"].shape[0]

    # conv1 + bn1 + relu
    p1, Ho, Wo = im2col_nhwc(x, ksize, stride, padding)
    w1 = params["conv1_w"].reshape(Cout, -1).T
    sb1 = fold_bn(params["conv1_b"], *params["bn1"])
    y1 = fused_matmul_affine(p1, w1, sb1, relu=True, out_dtype=jnp.bfloat16)
    y1_nhwc = y1.reshape(N, Ho, Wo, Cout)

    # identity / downsample branch, spatially aligned with conv1's output grid
    x_sub = x[:, ::stride, ::stride, :][:, :Ho, :Wo, :] if stride > 1 else x
    if Cin != Cout:
        wds = params["ds_w"].reshape(Cout, Cin).T
        sbds = fold_bn(jnp.zeros((Cout,), jnp.float32), *params["bn_ds"])
        identity = fused_matmul_affine(x_sub.reshape(-1, Cin), wds, sbds,
                                       relu=False, out_dtype=jnp.bfloat16)
    else:
        # PyTorch module has no downsample when Cin == Cout; guard stride > 1 by
        # spatial subsampling so shapes always match (review correctness note).
        identity = x_sub.reshape(-1, Cin)

    # conv2 + bn2 + residual add + relu (all fused in one kernel)
    p2, Ho2, Wo2 = im2col_nhwc(y1_nhwc, ksize, 1, padding)
    w2 = params["conv2_w"].reshape(Cout, -1).T
    sb2 = fold_bn(params["conv2_b"], *params["bn2"])
    y2 = fused_matmul_affine(p2, w2, sb2, residual=identity, relu=True,
                             out_dtype=jnp.float32)

    out = y2.reshape(N, Ho2, Wo2, Cout)
    return jnp.transpose(out, (0, 3, 1, 2))            # NHWC -> NCHW


# ----------------------------- pure-JAX reference ---------------------------

def _conv_ref(x, w, b, stride, padding):
    out = lax.conv_general_dilated(
        x, w, window_strides=(stride, stride),
        padding=[(padding, padding), (padding, padding)],
        dimension_numbers=("NCHW", "OIHW", "NCHW"))
    if b is not None:
        out = out + b[None, :, None, None]
    return out


def _bn_ref(x, gamma, beta, mean, var, eps=1e-5):
    g = gamma[None, :, None, None]
    bt = beta[None, :, None, None]
    m = mean[None, :, None, None]
    v = var[None, :, None, None]
    return (x - m) / jnp.sqrt(v + eps) * g + bt


def basic_block_ref(x, params, ksize, stride, padding):
    y = _conv_ref(x, params["conv1_w"], params["conv1_b"], stride, padding)
    y = jnp.maximum(_bn_ref(y, *params["bn1"]), 0.0)
    y = _conv_ref(y, params["conv2_w"], params["conv2_b"], 1, padding)
    y = _bn_ref(y, *params["bn2"])
    if params["conv1_w"].shape[0] != params["conv1_w"].shape[1]:
        idn = _conv_ref(x, params["ds_w"], None, stride, 0)
        idn = _bn_ref(idn, *params["bn_ds"])
    else:
        idn = x[:, :, ::stride, ::stride] if stride > 1 else x
    return jnp.maximum(y + idn, 0.0)


# ------------------------- self-test of the tiled path -----------------------

def _selftest_tiled_matmul():
    """Exercises the multi-block M/N/K grid (incl. masked M tail) at small size."""
    key = jax.random.PRNGKey(1)
    k1, k2, k3, k4, k5 = jax.random.split(key, 5)
    M, K, C = 400, 256, 256
    x = jax.random.normal(k1, (M, K), jnp.float32).astype(jnp.bfloat16)
    w = (0.05 * jax.random.normal(k2, (K, C), jnp.float32)).astype(jnp.bfloat16)
    sb = jnp.stack([1.0 + 0.1 * jax.random.normal(k3, (C,), jnp.float32),
                    0.1 * jax.random.normal(k4, (C,), jnp.float32)], axis=0)
    r = (0.1 * jax.random.normal(k5, (M, C), jnp.float32)).astype(jnp.bfloat16)

    out = fused_matmul_affine(x, w, sb, residual=r, relu=True,
                              out_dtype=jnp.float32, tm=128, tn=128, tk=128)
    out = jax.block_until_ready(out)

    ref = jnp.maximum(
        jnp.dot(x.astype(jnp.float32), w.astype(jnp.float32)) * sb[0]
        + sb[1] + r.astype(jnp.float32), 0.0)
    assert out.shape == ref.shape, (out.shape, ref.shape)
    assert jnp.allclose(out, ref, atol=1e-2, rtol=1e-2), \
        float(jnp.max(jnp.abs(out - ref)))


# ---------------------------------- main -------------------------------------

if __name__ == "__main__":
    # 1) validate the tiled (M, N, K) reduction path with a standalone check
    _selftest_tiled_matmul()

    # 2) full BasicBlock forward at small shapes
    key = jax.random.PRNGKey(0)
    N, Cin, H, W = 2, 4, 16, 16
    Cout, ksize, stride, padding = 8, 3, 2, 1   # channel change -> downsample branch

    ks = jax.random.split(key, 16)

    def bn_params(k):
        k1, k2, k3, k4 = jax.random.split(k, 4)
        gamma = 1.0 + 0.1 * jax.random.normal(k1, (Cout,), jnp.float32)
        beta = 0.1 * jax.random.normal(k2, (Cout,), jnp.float32)
        mean = 0.1 * jax.random.normal(k3, (Cout,), jnp.float32)
        var = 0.5 + jax.random.uniform(k4, (Cout,), jnp.float32)
        return (gamma, beta, mean, var)

    params = {
        "conv1_w": 0.1 * jax.random.normal(ks[0], (Cout, Cin, ksize, ksize), jnp.float32),
        "conv1_b": 0.1 * jax.random.normal(ks[1], (Cout,), jnp.float32),
        "bn1": bn_params(ks[2]),
        "conv2_w": 0.1 * jax.random.normal(ks[3], (Cout, Cout, ksize, ksize), jnp.float32),
        "conv2_b": 0.1 * jax.random.normal(ks[4], (Cout,), jnp.float32),
        "bn2": bn_params(ks[5]),
        "ds_w": 0.1 * jax.random.normal(ks[6], (Cout, Cin, 1, 1), jnp.float32),
        "bn_ds": bn_params(ks[7]),
    }

    x = jax.random.normal(ks[8], (N, Cin, H, W), jnp.float32)

    out = basic_block_forward(x, params, ksize, stride, padding)
    out = jax.block_until_ready(out)

    ref = basic_block_ref(x, params, ksize, stride, padding)
    assert out.shape == ref.shape, (out.shape, ref.shape)
    # bf16 matmul operands (f32 accumulation) vs a pure-f32 reference.
    assert jnp.allclose(out, ref, atol=5e-2, rtol=5e-2), \
        float(jnp.max(jnp.abs(out - ref)))

    print("KERNEL_OK")
</pallas_src>

<mosaic_0001>
module attributes {stable_mosaic.version = 11 : i64} {
  func.func @_matmul_bn_res_relu_kernel(%arg0: i32, %arg1: i32, %arg2: i32, %arg3: memref<128x128xbf16, #tpu.memory_space<vmem>>, %arg4: memref<128x128xbf16, #tpu.memory_space<vmem>>, %arg5: memref<2x128xf32, #tpu.memory_space<vmem>>, %arg6: memref<128x128xbf16, #tpu.memory_space<vmem>>, %arg7: memref<128x128xf32, #tpu.memory_space<vmem>>, %arg8: memref<128x128xf32, #tpu.memory_space<vmem>>) attributes {dimension_semantics = [#tpu.dimension_semantics<parallel>, #tpu.dimension_semantics<parallel>, #tpu.dimension_semantics<arbitrary>], iteration_bounds = array<i64: 4, 2, 2>, scalar_prefetch = 0 : i64, scratch_operands = 1 : i64, tpu.core_type = #tpu.core_type<tc>, window_params = [{transform_indices = @transform_0, window_bounds = array<i64: 128, 128>}, {transform_indices = @transform_1, window_bounds = array<i64: 128, 128>}, {transform_indices = @transform_2, window_bounds = array<i64: 2, 128>}, {transform_indices = @transform_3, window_bounds = array<i64: 128, 128>}, {transform_indices = @transform_4, window_bounds = array<i64: 128, 128>}]} {
    %c0_i32 = arith.constant 0 : i32
    %0 = arith.cmpi eq, %arg2, %c0_i32 : i32
    %1 = arith.extui %0 : i1 to i32
    %c0_i32_0 = arith.constant 0 : i32
    %2 = arith.cmpi ne, %1, %c0_i32_0 : i32
    scf.if %2 {
      %cst_9 = arith.constant 0.000000e+00 : f32
      %12 = vector.broadcast %cst_9 : f32 to vector<128x128xf32>
      %c0_10 = arith.constant 0 : index
      %c0_11 = arith.constant 0 : index
      %13 = vector.load %arg8[%c0_10, %c0_11] : memref<128x128xf32, #tpu.memory_space<vmem>>, vector<128x128xf32>
      tpu.vector_store %arg8[%c0_10, %c0_11], %12 {strides = array<i32>} : memref<128x128xf32, #tpu.memory_space<vmem>>, vector<128x128xf32>,
    } else {
    }
    %c0 = arith.constant 0 : index
    %c0_1 = arith.constant 0 : index
    %3 = vector.load %arg8[%c0, %c0_1] : memref<128x128xf32, #tpu.memory_space<vmem>>, vector<128x128xf32>
    %c0_2 = arith.constant 0 : index
    %c0_3 = arith.constant 0 : index
    %4 = vector.load %arg3[%c0_2, %c0_3] : memref<128x128xbf16, #tpu.memory_space<vmem>>, vector<128x128xbf16>
    %c0_4 = arith.constant 0 : index
    %c0_5 = arith.constant 0 : index
    %5 = vector.load %arg4[%c0_4, %c0_5] : memref<128x128xbf16, #tpu.memory_space<vmem>>, vector<128x128xbf16>
    %cst = arith.constant dense<0.000000e+00> : vector<128x128xf32>
    %6 = tpu.matmul %4, %5, %cst {dimension_numbers = #tpu.dot_dimension_numbers<[1], [0], [0], [1], [0, 0, 1, 1], [], []>} : vector<128x128xbf16>, vector<128x128xbf16>, vector<128x128xf32> -> vector<128x128xf32>
    %7 = arith.addf %3, %6 : vector<128x128xf32>
    %c0_6 = arith.constant 0 : index
    %c0_7 = arith.constant 0 : index
    %8 = vector.load %arg8[%c0_6, %c0_7] : memref<128x128xf32, #tpu.memory_space<vmem>>, vector<128x128xf32>
    tpu.vector_store %arg8[%c0_6, %c0_7], %7 {strides = array<i32>} : memref<128x128xf32, #tpu.memory_space<vmem>>, vector<128x128xf32>,
    %c1_i32 = arith.constant 1 : i32
    %9 = arith.cmpi eq, %arg2, %c1_i32 : i32
    %10 = arith.extui %9 : i1 to i32
    %c0_i32_8 = arith.constant 0 : i32
    %11 = arith.cmpi ne, %10, %c0_i32_8 : i32
    scf.if %11 {
      %c0_9 = arith.constant 0 : index
      %c0_10 = arith.constant 0 : index
      %12 = vector.load %arg8[%c0_9, %c0_10] : memref<128x128xf32, #tpu.memory_space<vmem>>, vector<128x128xf32>
      %c0_11 = arith.constant 0 : index
      %c0_12 = arith.constant 0 : index
      %13 = vector.load %arg5[%c0_11, %c0_12] : memref<2x128xf32, #tpu.memory_space<vmem>>, vector<1x128xf32>
      %14 = vector.broadcast %13 : vector<1x128xf32> to vector<128x128xf32>
      %15 = arith.mulf %12, %14 : vector<128x128xf32>
      %c1 = arith.constant 1 : index
      %c0_13 = arith.constant 0 : index
      %16 = vector.load %arg5[%c1, %c0_13] : memref<2x128xf32, #tpu.memory_space<vmem>>, vector<1x128xf32>
      %17 = vector.broadcast %16 : vector<1x128xf32> to vector<128x128xf32>
      %18 = arith.addf %15, %17 : vector<128x128xf32>
      %c0_14 = arith.constant 0 : index
      %c0_15 = arith.constant 0 : index
      %19 = vector.load %arg6[%c0_14, %c0_15] : memref<128x128xbf16, #tpu.memory_space<vmem>>, vector<128x128xbf16>
      %20 = arith.extf %19 : vector<128x128xbf16> to vector<128x128xf32>
      %21 = arith.addf %18, %20 : vector<128x128xf32>
      %cst_16 = arith.constant 0.000000e+00 : f32
      %22 = vector.broadcast %cst_16 : f32 to vector<128x128xf32>
      %23 = arith.maximumf %21, %22 : vector<128x128xf32>
      %c0_17 = arith.constant 0 : index
      %c0_18 = arith.constant 0 : index
      %24 = vector.load %arg7[%c0_17, %c0_18] : memref<128x128xf32, #tpu.memory_space<vmem>>, vector<128x128xf32>
      tpu.vector_store %arg7[%c0_17, %c0_18], %23 {strides = array<i32>} : memref<128x128xf32, #tpu.memory_space<vmem>>, vector<128x128xf32>,
    } else {
    }
    return
  }
  func.func @transform_0(%arg0: i32, %arg1: i32, %arg2: i32) -> (i32, i32) {
    %c0_i32 = arith.constant 0 : i32
    return %arg0, %arg2 : i32, i32
  }
  func.func @transform_1(%arg0: i32, %arg1: i32, %arg2: i32) -> (i32, i32) {
    %c0_i32 = arith.constant 0 : i32
    return %arg2, %arg1 : i32, i32
  }
  func.func @transform_2(%arg0: i32, %arg1: i32, %arg2: i32) -> (i32, i32) {
    %c0_i32 = arith.constant 0 : i32
    %c0_i32_0 = arith.constant 0 : i32
    return %c0_i32, %arg1 : i32, i32
  }
  func.func @transform_3(%arg0: i32, %arg1: i32, %arg2: i32) -> (i32, i32) {
    %c0_i32 = arith.constant 0 : i32
    return %arg0, %arg1 : i32, i32
  }
  func.func @transform_4(%arg0: i32, %arg1: i32, %arg2: i32) -> (i32, i32) {
    %c0_i32 = arith.constant 0 : i32
    return %arg0, %arg1 : i32, i32
  }
}

</mosaic_0001>

<llo_original>
// kernel: tpu_custom_call.1
$region0: #{tpu_custom_call.1}
  #allocation0 [shape = 'u32[]', space=smem, size = 0x4, offset = 0x4, fixed_abs, tag = 'smem constant byte address 0x4 - core index']
  #allocation1 [shape = 'u32[144,128]{1,0:T(1,128)}', space=vmem, size = 0x12000, scoped, tag = 'internal scratch']
  #allocation2 [shape = 'f32[128,128]{1,0:T(8,128)}', space=vmem, size = 0x10000, scoped, tag = 'scratch operand']
  %s0 = inlined_call_operand.hbm [shape: bf16[400,256], index: 0, kind: input, shape index: {}]
  %s1 = inlined_call_operand.hbm [shape: bf16[256,256], index: 1, kind: input, shape index: {}]
  %s2 = inlined_call_operand.vmem [shape: f32[2,256], index: 2, kind: input, shape index: {}]
  %s3 = inlined_call_operand.hbm [shape: bf16[400,256], index: 3, kind: input, shape index: {}]
  %s4 = inlined_call_operand.hbm [shape: f32[400,256], index: 4, kind: output, shape index: {}]
  %s5 = sld [smem:[#allocation0]]
  $region69: #{tpu_custom_call.1} parent=0
    _
  %s7 = ssub.s32 1, %s5
  %s8 = scalar_select 0, %s7, %s5
  $region1: #{tpu_custom_call.1} parent=0
    #allocation3 [shape = 'u8[65536]{0}', space=vmem, size = 0x10000, scoped, tag = 'input window, operand 0']
    #allocation4 [shape = 's32[2]{0}', space=sflag, size = 0x8, scoped, tag = 'scoped memory for tpu_custom_call.1']
    #allocation5 [shape = 's32[2]{0}', space=sflag, size = 0x8, scoped, tag = 'scoped memory for tpu_custom_call.1']
    #allocation6 [shape = 'u8[65536]{0}', space=vmem, size = 0x10000, scoped, tag = 'input window, operand 1']
    #allocation7 [shape = 's32[2]{0}', space=sflag, size = 0x8, scoped, tag = 'scoped memory for tpu_custom_call.1']
    #allocation8 [shape = 'u8[65536]{0}', space=vmem, size = 0x10000, scoped, tag = 'input window, operand 3']
    #allocation9 [shape = 'u8[131072]{0}', space=vmem, size = 0x20000, scoped, tag = 'output window, operand 0']
    %9 = vsyncpa [#allocation4], 0
    %s10 = scalar_lea.sflag [#allocation4], 1
    %11 = vsyncpa %s10, 0
    %12 = vsyncpa [#allocation7], 0
    %s13 = scalar_lea.sflag [#allocation7], 1
    %14 = vsyncpa %s13, 0
    %15 = vsyncpa [#allocation5], 0
    %s16 = scalar_lea.sflag [#allocation5], 1
    %17 = vsyncpa %s16, 0
    loop: start=0, step=1, limit=18
    $region2: #{tpu_custom_call.1} parent=1 // loop_pre_header
      _
    $region3: #{tpu_custom_call.1} parent=1 // loop_header
      %s19 = sphi 0, %s23
      %p20 = scmp.ge.s32.totalorder %s19, 18
      %s26 = sphi 0, %s45
      %s27 = sphi 0, %s41
      %s28 = sphi 0, %s37
      %s29 = sphi 0, %s26
      %s30 = sphi 0, %s27
      %s31 = sphi 0, %s28
      %s32 = sphi 0, %s29
      %s33 = sphi 0, %s30
      %s34 = sphi 0, %s31
      %s50 = sphi 0, %s52
      %s53 = sphi 0, %s50
      %s54 = sphi 0, %s53
      %s70 = sphi 0, %s54
      %s78 = sphi 0, %s80
      %s81 = sphi 0, %s78
      %s82 = sphi 0, %s81
      %s98 = sphi 0, %s82
      %s104 = sphi 0, %s106
      %s107 = sphi 0, %s104
      %s108 = sphi 0, %s107
      %s124 = sphi 0, %s108
      %s132 = sphi 0, %s134
      %s135 = sphi 0, %s132
      %s136 = sphi 0, %s135
      %s152 = sphi 0, %s136
      %s160 = sphi 0, %s162
      %s163 = sphi 0, %s160
      %s164 = sphi 0, %s163
      %s180 = sphi 0, %s164
    $region4: #{tpu_custom_call.1} parent=1 // loop_header_branch
      %22 = sbr.rel (%p20) target = $region8
    $region5: #{tpu_custom_call.1} parent=1 // loop_body
      %s24 = ssub.s32 %s19, 1
      %s25 = ssub.s32 %s19, 2
      %s35 = sadd.s32 1, %s28
      %p36 = scmp.ge.s32.totalorder %s35, 2
      %s37 = scalar_select %p36, 0, %s35
      %s38 = sadd.s32 1, %s27
      %s39 = scalar_select %p36, %s38, %s27
      %p40 = scmp.ge.s32.totalorder %s39, 2
      %s41 = scalar_select %p40, 0, %s39
      %s42 = sadd.s32 1, %s26
      %s43 = scalar_select %p40, %s42, %s26
      %p44 = scmp.ge.s32.totalorder %s43, 4
      %s45 = scalar_select %p44, 0, %s43
      %s46 = ssub.s32 %s26, %s45
      %s47 = ssub.s32 %s28, %s37
      %s48 = sor.u32 %s46, %s47
      %p49 = scmp.eq.s32.totalorder %s48, 0
      %s51 = sadd.s32 %s50, 1
      %s52 = scalar_select %p49, %s50, %s51
      %p55 = pneg %p49
      %p56 = scmp.eq.s32.totalorder %s19, 15
      %p57 = por %p55, %p56
      %p58 = scmp.ne.s32.totalorder %s50, %s53
      %p59 = scmp.eq.s32.totalorder %s19, 0
      %p60 = por %p58, %p59
      %p61 = scmp.ne.s32.totalorder %s50, %s53
      %p62 = scmp.eq.s32.totalorder %s24, 15
      %p63 = por %p61, %p62
      %p64 = scmp.ne.s32.totalorder %s53, %s54
      %p65 = scmp.eq.s32.totalorder %s24, 0
      %p66 = por %p64, %p65
      %p67 = scmp.ne.s32.totalorder %s53, %s54
      %p68 = scmp.eq.s32.totalorder %s25, 15
      %p69 = por %p67, %p68
      %p71 = scmp.ne.s32.totalorder %s54, %s70
      %p72 = scmp.eq.s32.totalorder %s25, 0
      %p73 = por %p71, %p72
      %s74 = ssub.s32 %s28, %s37
      %s75 = ssub.s32 %s27, %s41
      %s76 = sor.u32 %s74, %s75
      %p77 = scmp.eq.s32.totalorder %s76, 0
      %s79 = sadd.s32 %s78, 1
      %s80 = scalar_select %p77, %s78, %s79
      %p83 = pneg %p77
      %p84 = scmp.eq.s32.totalorder %s19, 15
      %p85 = por %p83, %p84
      %p86 = scmp.ne.s32.totalorder %s78, %s81
      %p87 = scmp.eq.s32.totalorder %s19, 0
      %p88 = por %p86, %p87
      %p89 = scmp.ne.s32.totalorder %s78, %s81
      %p90 = scmp.eq.s32.totalorder %s24, 15
      %p91 = por %p89, %p90
      %p92 = scmp.ne.s32.totalorder %s81, %s82
      %p93 = scmp.eq.s32.totalorder %s24, 0
      %p94 = por %p92, %p93
      %p95 = scmp.ne.s32.totalorder %s81, %s82
      %p96 = scmp.eq.s32.totalorder %s25, 15
      %p97 = por %p95, %p96
      %p99 = scmp.ne.s32.totalorder %s82, %s98
      %p100 = scmp.eq.s32.totalorder %s25, 0
      %p101 = por %p99, %p100
      %s102 = ssub.s32 %s27, %s41
      %p103 = scmp.eq.s32.totalorder %s102, 0
      %s105 = sadd.s32 %s104, 1
      %s106 = scalar_select %p103, %s104, %s105
      %p109 = pneg %p103
      %p110 = scmp.eq.s32.totalorder %s19, 15
      %p111 = por %p109, %p110
      %p112 = scmp.ne.s32.totalorder %s104, %s107
      %p113 = scmp.eq.s32.totalorder %s19, 0
      %p114 = por %p112, %p113
      %p115 = scmp.ne.s32.totalorder %s104, %s107
      %p116 = scmp.eq.s32.totalorder %s24, 15
      %p117 = por %p115, %p116
      %p118 = scmp.ne.s32.totalorder %s107, %s108
      %p119 = scmp.eq.s32.totalorder %s24, 0
      %p120 = por %p118, %p119
      %p121 = scmp.ne.s32.totalorder %s107, %s108
      %p122 = scmp.eq.s32.totalorder %s25, 15
      %p123 = por %p121, %p122
      %p125 = scmp.ne.s32.totalorder %s108, %s124
      %p126 = scmp.eq.s32.totalorder %s25, 0
      %p127 = por %p125, %p126
      %s128 = ssub.s32 %s26, %s45
      %s129 = ssub.s32 %s27, %s41
      %s130 = sor.u32 %s128, %s129
      %p131 = scmp.eq.s32.totalorder %s130, 0
      %s133 = sadd.s32 %s132, 1
      %s134 = scalar_select %p131, %s132, %s133
      %p137 = pneg %p131
      %p138 = scmp.eq.s32.totalorder %s19, 15
      %p139 = por %p137, %p138
      %p140 = scmp.ne.s32.totalorder %s132, %s135
      %p141 = scmp.eq.s32.totalorder %s19, 0
      %p142 = por %p140, %p141
      %p143 = scmp.ne.s32.totalorder %s132, %s135
      %p144 = scmp.eq.s32.totalorder %s24, 15
      %p145 = por %p143, %p144
      %p146 = scmp.ne.s32.totalorder %s135, %s136
      %p147 = scmp.eq.s32.totalorder %s24, 0
      %p148 = por %p146, %p147
      %p149 = scmp.ne.s32.totalorder %s135, %s136
      %p150 = scmp.eq.s32.totalorder %s25, 15
      %p151 = por %p149, %p150
      %p153 = scmp.ne.s32.totalorder %s136, %s152
      %p154 = scmp.eq.s32.totalorder %s25, 0
      %p155 = por %p153, %p154
      %s156 = ssub.s32 %s26, %s45
      %s157 = ssub.s32 %s27, %s41
      %s158 = sor.u32 %s156, %s157
      %p159 = scmp.eq.s32.totalorder %s158, 0
      %s161 = sadd.s32 %s160, 1
      %s162 = scalar_select %p159, %s160, %s161
      %p165 = pneg %p159
      %p166 = scmp.eq.s32.totalorder %s19, 15
      %p167 = por %p165, %p166
      %p168 = scmp.ne.s32.totalorder %s160, %s163
      %p169 = scmp.eq.s32.totalorder %s19, 0
      %p170 = por %p168, %p169
      %p171 = scmp.ne.s32.totalorder %s160, %s163
      %p172 = scmp.eq.s32.totalorder %s24, 15
      %p173 = por %p171, %p172
      %p174 = scmp.ne.s32.totalorder %s163, %s164
      %p175 = scmp.eq.s32.totalorder %s24, 0
      %p176 = por %p174, %p175
      %p177 = scmp.ne.s32.totalorder %s163, %s164
      %p178 = scmp.eq.s32.totalorder %s25, 15
      %p179 = por %p177, %p178
      %p181 = scmp.ne.s32.totalorder %s164, %s180
      %p182 = scmp.eq.s32.totalorder %s25, 0
      %p183 = por %p181, %p182
      %p184 = scmp.le.s32.totalorder 1, %s19
      %p185 = scmp.lt.s32.totalorder %s19, 17
      %p186 = pnand %p184, %p185
      %p187 = pneg %p186
      // Predicated region
      $region9: #{tpu_custom_call.1} parent=5 // pred_check
        _
      $region10: #{tpu_custom_call.1} parent=5 // pred_check_branch
        %189 = sbr.rel (%p186) target = $region12
      $region11: #{tpu_custom_call.1} parent=5 // pred_region
        %s190 = ssub.s32 %s19, 1
      $region12: #{tpu_custom_call.1} parent=5 // pred_fallthru
        _
      %p191 = scmp.lt.s32.totalorder %s19, 16
      // Predicated region
      $region13: #{tpu_custom_call.1} parent=5 // pred_check
        %p192 = pneg %p191
      $region14: #{tpu_custom_call.1} parent=5 // pred_check_branch
        %194 = sbr.rel (%p192) target = $region16
      $region15: #{tpu_custom_call.1} parent=5 // pred_region
        // Predicated region
        $region17: #{tpu_custom_call.1} parent=15 // pred_check
          %p195 = pneg %p60
        $region18: #{tpu_custom_call.1} parent=15 // pred_check_branch
          %197 = sbr.rel (%p195) target = $region20
        $region19: #{tpu_custom_call.1} parent=15 // pred_region
          %s198 = sand.u32 %s50, 1
          %s199 = scalar_lea.sflag [#allocation4], %s198
          %s200 = sand.u32 %s50, 1
          %s201 = smul.addr %s200, 64
          %s202 = scalar_lea.vmem [#allocation3], %s201
          %s203 = smul.u32 16, %s26
          %s204 = ssub.s32 50, %s203
          %p205 = scmp.lt.s32.totalorder %s204, 16
          %s206 = scalar_select %p205, %s204, 16
          %s207 = smul.u32 64, %s206
          %s209 = ssub.s32 1024, %s207
          %210 = vsyncadd %s199, %s209
          %p211 = scmp.ne.s32.totalorder 0, %s207
          %s212 = smul.addr %s203, 2
          %s213 = sadd.s32 %s28, %s212
          %s214 = smul.addr %s213, 64
          %s215 = scalar_lea.hbm %s0, %s214
          %s216 = smul.u32 4, %s206
          %s217 = sshll.u32 %s202, 4
          %s218 = int_to_ptr.vmem [resolvable:$true] %s217
          %s219 = sshll.u32 %s216, 4
          %223 = dma.hbm_to_vmem [thread:$0]  (%p211), %s215, %s219, %s218, %s199, 128, 64, 4
        $region20: #{tpu_custom_call.1} parent=15 // pred_fallthru
          _
        // Predicated region
        $region21: #{tpu_custom_call.1} parent=15 // pred_check
          %p224 = pneg %p88
        $region22: #{tpu_custom_call.1} parent=15 // pred_check_branch
          %226 = sbr.rel (%p224) target = $region24
        $region23: #{tpu_custom_call.1} parent=15 // pred_region
          %s227 = sand.u32 %s19, 1
          %s228 = scalar_lea.sflag [#allocation7], %s227
          %s229 = sand.u32 %s78, 1
          %s230 = smul.addr %s229, 64
          %s231 = scalar_lea.vmem [#allocation6], %s230
          %s232 = smul.u32 16, %s28
          %s234 = ssub.s32 1024, 1024
          %235 = vsyncadd %s228, %s234
          %s236 = smul.addr %s232, 2
          %s237 = sadd.s32 %s27, %s236
          %s238 = smul.addr %s237, 64
          %s239 = scalar_lea.hbm %s1, %s238
          %s240 = sshll.u32 %s231, 4
          %s241 = int_to_ptr.vmem [resolvable:$true] %s240
          %246 = dma.hbm_to_vmem [thread:$0]  %s239, 1024, %s241, %s228, 128, 64, 4
        $region24: #{tpu_custom_call.1} parent=15 // pred_fallthru
          _
        // Predicated region
        $region25: #{tpu_custom_call.1} parent=15 // pred_check
          %p247 = pneg %p114
        $region26: #{tpu_custom_call.1} parent=15 // pred_check_branch
          %249 = sbr.rel (%p247) target = $region28
        $region27: #{tpu_custom_call.1} parent=15 // pred_region
          %p250 = scmp.lt.s32.totalorder %s27, 1
          %s251 = scalar_select %p250, %s27, 1
          %s252 = smul.addr %s251, 2
          %s253 = scalar_lea.vmem %s2, %s252
        $region28: #{tpu_custom_call.1} parent=15 // pred_fallthru
          _
        // Predicated region
        $region29: #{tpu_custom_call.1} parent=15 // pred_check
          %p254 = pneg %p142
        $region30: #{tpu_custom_call.1} parent=15 // pred_check_branch
          %256 = sbr.rel (%p254) target = $region32
        $region31: #{tpu_custom_call.1} parent=15 // pred_region
          %s257 = sand.u32 %s19, 1
          %s258 = scalar_lea.sflag [#allocation7], %s257
          %s259 = sand.u32 %s132, 1
          %s260 = smul.addr %s259, 64
          %s261 = scalar_lea.vmem [#allocation8], %s260
          %s262 = smul.u32 16, %s26
          %s263 = ssub.s32 50, %s262
          %p264 = scmp.lt.s32.totalorder %s263, 16
          %s265 = scalar_select %p264, %s263, 16
          %s266 = smul.u32 64, %s265
          %s268 = ssub.s32 1024, %s266
          %269 = vsyncadd %s258, %s268
          %p270 = scmp.ne.s32.totalorder 0, %s266
          %s271 = smul.addr %s262, 2
          %s272 = sadd.s32 %s27, %s271
          %s273 = smul.addr %s272, 64
          %s274 = scalar_lea.hbm %s3, %s273
          %s275 = smul.u32 4, %s265
          %s276 = sshll.u32 %s261, 4
          %s277 = int_to_ptr.vmem [resolvable:$true] %s276
          %s278 = sshll.u32 %s275, 4
          %282 = dma.hbm_to_vmem [thread:$0]  (%p270), %s274, %s278, %s277, %s258, 128, 64, 4
        $region32: #{tpu_custom_call.1} parent=15 // pred_fallthru
          _
      $region16: #{tpu_custom_call.1} parent=5 // pred_fallthru
        _
      %p283 = scmp.le.s32.totalorder 1, %s19
      %p284 = scmp.lt.s32.totalorder %s19, 17
      %p285 = pnand %p283, %p284
      %p286 = pneg %p285
      // Predicated region
      $region33: #{tpu_custom_call.1} parent=5 // pred_check
        _
      $region34: #{tpu_custom_call.1} parent=5 // pred_check_branch
        %288 = sbr.rel (%p285) target = $region36
      $region35: #{tpu_custom_call.1} parent=5 // pred_region
        %s289 = ssub.s32 %s19, 1
        %s290 = sand.u32 %s53, 1
        %s291 = scalar_lea.sflag [#allocation4], %s290
        %s292 = sand.u32 %s53, 1
        %s293 = smul.addr %s292, 64
        %s294 = scalar_lea.vmem [#allocation3], %s293
        // Predicated region
        $region37: #{tpu_custom_call.1} parent=35 // pred_check
          %p295 = pneg %p66
        $region38: #{tpu_custom_call.1} parent=35 // pred_check_branch
          %297 = sbr.rel (%p295) target = $region40
        $region39: #{tpu_custom_call.1} parent=35 // pred_region
          %298 = dma.done %s291, 1024
        $region40: #{tpu_custom_call.1} parent=35 // pred_fallthru
          _
        %s299 = sand.u32 %s24, 1
        %s300 = scalar_lea.sflag [#allocation7], %s299
        %s301 = sand.u32 %s81, 1
        %s302 = smul.addr %s301, 64
        %s303 = scalar_lea.vmem [#allocation6], %s302
        // Predicated region
        $region41: #{tpu_custom_call.1} parent=35 // pred_check
          %p304 = pneg %p94
        $region42: #{tpu_custom_call.1} parent=35 // pred_check_branch
          %306 = sbr.rel (%p304) target = $region44
        $region43: #{tpu_custom_call.1} parent=35 // pred_region
          %307 = dma.done %s300, 1024
        $region44: #{tpu_custom_call.1} parent=35 // pred_fallthru
          _
        %s308 = sand.u32 %s24, 1
        %s309 = scalar_lea.sflag [#allocation7], %s308
        %s310 = sand.u32 %s135, 1
        %s311 = smul.addr %s310, 64
        %s312 = scalar_lea.vmem [#allocation8], %s311
        // Predicated region
        $region45: #{tpu_custom_call.1} parent=35 // pred_check
          %p313 = pneg %p148
        $region46: #{tpu_custom_call.1} parent=35 // pred_check_branch
          %315 = sbr.rel (%p313) target = $region48
        $region47: #{tpu_custom_call.1} parent=35 // pred_region
          %316 = dma.done %s309, 1024
        $region48: #{tpu_custom_call.1} parent=35 // pred_fallthru
          _
        %s317 = sand.u32 %s53, 1
        %s318 = scalar_lea.sflag [#allocation4], %s317
        %s319 = sand.u32 %s53, 1
        %s320 = smul.addr %s319, 64
        %s321 = scalar_lea.vmem [#allocation3], %s320
        %p322 = pneg %p66
        %p323 = pneg %p63
        %s324 = sand.u32 %s24, 1
        %s325 = scalar_lea.sflag [#allocation7], %s324
        %s326 = sand.u32 %s81, 1
        %s327 = smul.addr %s326, 64
        %s328 = scalar_lea.vmem [#allocation6], %s327
        %p329 = pneg %p94
        %p330 = pneg %p91
        %p331 = scmp.lt.s32.totalorder %s30, 1
        %s332 = scalar_select %p331, %s30, 1
        %s333 = smul.addr %s332, 2
        %s334 = scalar_lea.vmem %s2, %s333
        %p335 = pneg %p120
        %p336 = pneg %p117
        %s337 = sand.u32 %s24, 1
        %s338 = scalar_lea.sflag [#allocation7], %s337
        %s339 = sand.u32 %s135, 1
        %s340 = smul.addr %s339, 64
        %s341 = scalar_lea.vmem [#allocation8], %s340
        %p342 = pneg %p148
        %p343 = pneg %p145
        %p344 = pneg %p176
        %p345 = pneg %p173
        %s346 = sand.u32 %s163, 1
        %s347 = scalar_lea.sflag [#allocation5], %s346
        %s348 = sand.u32 %s163, 1
        %s349 = smul.addr %s348, 128
        %s350 = scalar_lea.vmem [#allocation9], %s349
        %s351 = smul.u32 16, %s29
        %s352 = ssub.s32 50, %s351
        %p353 = scmp.lt.s32.totalorder %s352, 16
        %s354 = scalar_select %p353, %s352, 16
        %s355 = smul.u32 64, %s354
        %s356 = smul.u32 16, %s31
        %p357 = scmp.lt.s32.totalorder %s30, 1
        %s358 = scalar_select %p357, %s30, 1
        %s359 = smul.addr %s358, 2
        %s360 = scalar_lea.vmem %s2, %s359
        %s361 = smul.u32 16, %s29
        %s362 = ssub.s32 50, %s361
        %p363 = scmp.lt.s32.totalorder %s362, 16
        %s364 = scalar_select %p363, %s362, 16
        %s365 = smul.u32 64, %s364
        %s366 = smul.u32 16, %s29
        %s367 = ssub.s32 50, %s366
        %p368 = scmp.lt.s32.totalorder %s367, 16
        %s369 = scalar_select %p368, %s367, 16
        %s370 = smul.u32 128, %s369
        %p372 = scmp.eq.s32.totalorder %s31, 0
        // Predicated region
        $region49: #{tpu_custom_call.1} parent=35 // pred_check
          %p373 = pneg %p372
        $region50: #{tpu_custom_call.1} parent=35 // pred_check_branch
          %375 = sbr.rel (%p373) target = $region52
        $region51: #{tpu_custom_call.1} parent=35 // pred_region
          %376 = vst [vmem:[#allocation2] sm:$0xff] 0.0
          %377 = vst [vmem:[#allocation2 + $0x8] sm:$0xff] 0.0
          %378 = vst [vmem:[#allocation2 + $0x10] sm:$0xff] 0.0
          %379 = vst [vmem:[#allocation2 + $0x18] sm:$0xff] 0.0
          %380 = vst [vmem:[#allocation2 + $0x20] sm:$0xff] 0.0
          %381 = vst [vmem:[#allocation2 + $0x28] sm:$0xff] 0.0
          %382 = vst [vmem:[#allocation2 + $0x30] sm:$0xff] 0.0
          %383 = vst [vmem:[#allocation2 + $0x38] sm:$0xff] 0.0
          %384 = vst [vmem:[#allocation2 + $0x40] sm:$0xff] 0.0
          %385 = vst [vmem:[#allocation2 + $0x48] sm:$0xff] 0.0
          %386 = vst [vmem:[#allocation2 + $0x50] sm:$0xff] 0.0
          %387 = vst [vmem:[#allocation2 + $0x58] sm:$0xff] 0.0
          %388 = vst [vmem:[#allocation2 + $0x60] sm:$0xff] 0.0
          %389 = vst [vmem:[#allocation2 + $0x68] sm:$0xff] 0.0
          %390 = vst [vmem:[#allocation2 + $0x70] sm:$0xff] 0.0
          %391 = vst [vmem:[#allocation2 + $0x78] sm:$0xff] 0.0
        $region52: #{tpu_custom_call.1} parent=35 // pred_fallthru
          _
        %v392 = vld [vmem:[#allocation2] sm:$0xff]
        %v393 = vld [vmem:[#allocation2 + $0x8] sm:$0xff]
        %v394 = vld [vmem:[#allocation2 + $0x10] sm:$0xff]
        %v395 = vld [vmem:[#allocation2 + $0x18] sm:$0xff]
        %v396 = vld [vmem:[#allocation2 + $0x20] sm:$0xff]
        %v397 = vld [vmem:[#allocation2 + $0x28] sm:$0xff]
        %v398 = vld [vmem:[#allocation2 + $0x30] sm:$0xff]
        %v399 = vld [vmem:[#allocation2 + $0x38] sm:$0xff]
        %v400 = vld [vmem:[#allocation2 + $0x40] sm:$0xff]
        %v401 = vld [vmem:[#allocation2 + $0x48] sm:$0xff]
        %v402 = vld [vmem:[#allocation2 + $0x50] sm:$0xff]
        %v403 = vld [vmem:[#allocation2 + $0x58] sm:$0xff]
        %v404 = vld [vmem:[#allocation2 + $0x60] sm:$0xff]
        %v405 = vld [vmem:[#allocation2 + $0x68] sm:$0xff]
        %v406 = vld [vmem:[#allocation2 + $0x70] sm:$0xff]
        %v407 = vld [vmem:[#allocation2 + $0x78] sm:$0xff]
        %v408 = vld [vmem:[%s294] sm:$0xf]
        %v409 = vld [vmem:[%s294 + $0x4] sm:$0xf]
        %v410 = vld [vmem:[%s294 + $0x8] sm:$0xf]
        %v411 = vld [vmem:[%s294 + $0xc] sm:$0xf]
        %v412 = vld [vmem:[%s294 + $0x10] sm:$0xf]
        %v413 = vld [vmem:[%s294 + $0x14] sm:$0xf]
        %v414 = vld [vmem:[%s294 + $0x18] sm:$0xf]
        %v415 = vld [vmem:[%s294 + $0x1c] sm:$0xf]
        %v416 = vld [vmem:[%s294 + $0x20] sm:$0xf]
        %v417 = vld [vmem:[%s294 + $0x24] sm:$0xf]
        %v418 = vld [vmem:[%s294 + $0x28] sm:$0xf]
        %v419 = vld [vmem:[%s294 + $0x2c] sm:$0xf]
        %v420 = vld [vmem:[%s294 + $0x30] sm:$0xf]
        %v421 = vld [vmem:[%s294 + $0x34] sm:$0xf]
        %v422 = vld [vmem:[%s294 + $0x38] sm:$0xf]
        %v423 = vld [vmem:[%s294 + $0x3c] sm:$0xf]
        %v424 = vld [vmem:[%s303] sm:$0xf]
        %v425 = vld [vmem:[%s303 + $0x4] sm:$0xf]
        %v426 = vld [vmem:[%s303 + $0x8] sm:$0xf]
        %v427 = vld [vmem:[%s303 + $0xc] sm:$0xf]
        %v428 = vld [vmem:[%s303 + $0x10] sm:$0xf]
        %v429 = vld [vmem:[%s303 + $0x14] sm:$0xf]
        %v430 = vld [vmem:[%s303 + $0x18] sm:$0xf]
        %v431 = vld [vmem:[%s303 + $0x1c] sm:$0xf]
        %v432 = vld [vmem:[%s303 + $0x20] sm:$0xf]
        %v433 = vld [vmem:[%s303 + $0x24] sm:$0xf]
        %v434 = vld [vmem:[%s303 + $0x28] sm:$0xf]
        %v435 = vld [vmem:[%s303 + $0x2c] sm:$0xf]
        %v436 = vld [vmem:[%s303 + $0x30] sm:$0xf]
        %v437 = vld [vmem:[%s303 + $0x34] sm:$0xf]
        %v438 = vld [vmem:[%s303 + $0x38] sm:$0xf]
        %v439 = vld [vmem:[%s303 + $0x3c] sm:$0xf]
        %v456 = vunpack.c.l.b16 %v408
        %v457 = vunpack.c.l.b16 %v409
        %v458 = vunpack.c.l.b16 %v410
        %v459 = vunpack.c.l.b16 %v411
        %v460 = vunpack.c.l.b16 %v412
        %v461 = vunpack.c.l.b16 %v413
        %v462 = vunpack.c.l.b16 %v414
        %v463 = vunpack.c.l.b16 %v415
        %v464 = vunpack.c.l.b16 %v416
        %v465 = vunpack.c.l.b16 %v417
        %v466 = vunpack.c.l.b16 %v418
        %v467 = vunpack.c.l.b16 %v419
        %v468 = vunpack.c.l.b16 %v420
        %v469 = vunpack.c.l.b16 %v421
        %v470 = vunpack.c.l.b16 %v422
        %v471 = vunpack.c.l.b16 %v423
        %v472 = vpack.c.b16 %v457, %v456
        %v473 = vpack.c.b16 %v459, %v458
        %v474 = vpack.c.b16 %v461, %v460
        %v475 = vpack.c.b16 %v463, %v462
        %v476 = vpack.c.b16 %v465, %v464
        %v477 = vpack.c.b16 %v467, %v466
        %v478 = vpack.c.b16 %v469, %v468
        %v479 = vpack.c.b16 %v471, %v470
        %v504 = vunpack.c.l.b16 %v424
        %v505 = vunpack.c.l.b16 %v425
        %v506 = vunpack.c.l.b16 %v426
        %v507 = vunpack.c.l.b16 %v427
        %v508 = vunpack.c.l.b16 %v428
        %v509 = vunpack.c.l.b16 %v429
        %v510 = vunpack.c.l.b16 %v430
        %v511 = vunpack.c.l.b16 %v431
        %v512 = vunpack.c.l.b16 %v432
        %v513 = vunpack.c.l.b16 %v433
        %v514 = vunpack.c.l.b16 %v434
        %v515 = vunpack.c.l.b16 %v435
        %v516 = vunpack.c.l.b16 %v436
        %v517 = vunpack.c.l.b16 %v437
        %v518 = vunpack.c.l.b16 %v438
        %v519 = vunpack.c.l.b16 %v439
        %v520 = vpack.c.b16 %v505, %v504
        %v521 = vpack.c.b16 %v507, %v506
        %v522 = vpack.c.b16 %v509, %v508
        %v523 = vpack.c.b16 %v511, %v510
        %v524 = vpack.c.b16 %v513, %v512
        %v525 = vpack.c.b16 %v515, %v514
        %v526 = vpack.c.b16 %v517, %v516
        %v527 = vpack.c.b16 %v519, %v518
        %536 = vmatprep.subr.bf16.mxu0 0
        %537 = vmatpush1.bf16.msra.mxu0 %v520
        %538 = vmatprep.subr.bf16.mxu0 0
        %539 = vmatpush1.bf16.msra.mxu0 %v521
        %540 = vmatprep.subr.bf16.mxu0 0
        %541 = vmatpush1.bf16.msra.mxu0 %v522
        %542 = vmatprep.subr.bf16.mxu0 0
        %543 = vmatpush1.bf16.msra.mxu0 %v523
        %544 = vmatprep.subr.bf16.mxu0 0
        %545 = vmatpush1.bf16.msra.mxu0 %v524
        %546 = vmatprep.subr.bf16.mxu0 0
        %547 = vmatpush1.bf16.msra.mxu0 %v525
        %548 = vmatprep.subr.bf16.mxu0 0
        %549 = vmatpush1.bf16.msra.mxu0 %v526
        %550 = vmatprep.subr.bf16.mxu0 0
        %551 = vmatpush1.bf16.msra.mxu0 %v527
        %552 = vmatprep.subr.bf16.mxu0 0
        %553 = vmatpush1.bf16.msra.mxu0 0
        %554 = vmatprep.subr.bf16.mxu0 0
        %555 = vmatpush1.bf16.msra.mxu0 0
        %556 = vmatprep.subr.bf16.mxu0 0
        %557 = vmatpush1.bf16.msra.mxu0 0
        %558 = vmatprep.subr.bf16.mxu0 0
        %559 = vmatpush1.bf16.msra.mxu0 0
        %560 = vmatprep.subr.bf16.mxu0 0
        %561 = vmatpush1.bf16.msra.mxu0 0
        %562 = vmatprep.subr.bf16.mxu0 0
        %563 = vmatpush1.bf16.msra.mxu0 0
        %564 = vmatprep.subr.bf16.mxu0 0
        %565 = vmatpush1.bf16.msra.mxu0 0
        %566 = vmatprep.subr.bf16.mxu0 0
        %567 = vmatpush1.bf16.msra.mxu0 0
        %568 = vmatprep.mubr.bf16.mxu0 0
        %569 = vmatmul.mubr.bf16.gmra.mrb[0].mxu0 %v472
        %v570 = vpop.f32.mrb[0].mxu0
        %v571 = vadd.f32 0.0, %v570
        %v572 = vpop.f32.mrb[0].mxu0
        %v573 = vpop.f32.mrb[0].mxu0
        %v574 = vadd.f32 0.0, %v573
        %v575 = vpop.f32.mrb[0].mxu0
        %576 = vmatprep.mubr.bf16.mxu0 0
        %577 = vmatmul.mubr.bf16.gmra.mrb[0].mxu0 %v473
        %v578 = vpop.f32.mrb[0].mxu0
        %v579 = vadd.f32 0.0, %v578
        %v580 = vpop.f32.mrb[0].mxu0
        %v581 = vpop.f32.mrb[0].mxu0
        %v582 = vadd.f32 0.0, %v581
        %v583 = vpop.f32.mrb[0].mxu0
        %584 = vmatprep.mubr.bf16.mxu0 0
        %585 = vmatmul.mubr.bf16.gmra.mrb[0].mxu0 %v474
        %v586 = vpop.f32.mrb[0].mxu0
        %v587 = vadd.f32 0.0, %v586
        %v588 = vpop.f32.mrb[0].mxu0
        %v589 = vpop.f32.mrb[0].mxu0
        %v590 = vadd.f32 0.0, %v589
        %v591 = vpop.f32.mrb[0].mxu0
        %592 = vmatprep.mubr.bf16.mxu0 0
        %593 = vmatmul.mubr.bf16.gmra.mrb[0].mxu0 %v475
        %v594 = vpop.f32.mrb[0].mxu0
        %v595 = vadd.f32 0.0, %v594
        %v596 = vpop.f32.mrb[0].mxu0
        %v597 = vpop.f32.mrb[0].mxu0
        %v598 = vadd.f32 0.0, %v597
        %v599 = vpop.f32.mrb[0].mxu0
        %600 = vmatprep.mubr.bf16.mxu0 0
        %601 = vmatmul.mubr.bf16.gmra.mrb[0].mxu0 %v476
        %v602 = vpop.f32.mrb[0].mxu0
        %v603 = vadd.f32 0.0, %v602
        %v604 = vpop.f32.mrb[0].mxu0
        %v605 = vpop.f32.mrb[0].mxu0
        %v606 = vadd.f32 0.0, %v605
        %v607 = vpop.f32.mrb[0].mxu0
        %608 = vmatprep.mubr.bf16.mxu0 0
        %609 = vmatmul.mubr.bf16.gmra.mrb[0].mxu0 %v477
        %v610 = vpop.f32.mrb[0].mxu0
        %v611 = vadd.f32 0.0, %v610
        %v612 = vpop.f32.mrb[0].mxu0
        %v613 = vpop.f32.mrb[0].mxu0
        %v614 = vadd.f32 0.0, %v613
        %v615 = vpop.f32.mrb[0].mxu0
        %616 = vmatprep.mubr.bf16.mxu0 0
        %617 = vmatmul.mubr.bf16.gmra.mrb[0].mxu0 %v478
        %v618 = vpop.f32.mrb[0].mxu0
        %v619 = vadd.f32 0.0, %v618
        %v620 = vpop.f32.mrb[0].mxu0
        %v621 = vpop.f32.mrb[0].mxu0
        %v622 = vadd.f32 0.0, %v621
        %v623 = vpop.f32.mrb[0].mxu0
        %624 = vmatprep.mubr.bf16.mxu0 0
        %625 = vmatmul.mubr.bf16.gmra.mrb[0].mxu0 %v479
        %v626 = vpop.f32.mrb[0].mxu0
        %v627 = vadd.f32 0.0, %v626
        %v628 = vpop.f32.mrb[0].mxu0
        %v629 = vpop.f32.mrb[0].mxu0
        %v630 = vadd.f32 0.0, %v629
        %v631 = vpop.f32.mrb[0].mxu0
        %632 = vdwg.mxu0
        %v633 = vadd.f32 %v392, %v571
        %v634 = vadd.f32 %v393, %v574
        %v635 = vadd.f32 %v394, %v579
        %v636 = vadd.f32 %v395, %v582
        %v637 = vadd.f32 %v396, %v587
        %v638 = vadd.f32 %v397, %v590
        %v639 = vadd.f32 %v398, %v595
        %v640 = vadd.f32 %v399, %v598
        %v641 = vadd.f32 %v400, %v603
        %v642 = vadd.f32 %v401, %v606
        %v643 = vadd.f32 %v402, %v611
        %v644 = vadd.f32 %v403, %v614
        %v645 = vadd.f32 %v404, %v619
        %v646 = vadd.f32 %v405, %v622
        %v647 = vadd.f32 %v406, %v627
        %v648 = vadd.f32 %v407, %v630
        %649 = vst [vmem:[#allocation2] sm:$0xff] %v633
        %650 = vst [vmem:[#allocation2 + $0x8] sm:$0xff] %v634
        %651 = vst [vmem:[#allocation2 + $0x10] sm:$0xff] %v635
        %652 = vst [vmem:[#allocation2 + $0x18] sm:$0xff] %v636
        %653 = vst [vmem:[#allocation2 + $0x20] sm:$0xff] %v637
        %654 = vst [vmem:[#allocation2 + $0x28] sm:$0xff] %v638
        %655 = vst [vmem:[#allocation2 + $0x30] sm:$0xff] %v639
        %656 = vst [vmem:[#allocation2 + $0x38] sm:$0xff] %v640
        %657 = vst [vmem:[#allocation2 + $0x40] sm:$0xff] %v641
        %658 = vst [vmem:[#allocation2 + $0x48] sm:$0xff] %v642
        %659 = vst [vmem:[#allocation2 + $0x50] sm:$0xff] %v643
        %660 = vst [vmem:[#allocation2 + $0x58] sm:$0xff] %v644
        %661 = vst [vmem:[#allocation2 + $0x60] sm:$0xff] %v645
        %662 = vst [vmem:[#allocation2 + $0x68] sm:$0xff] %v646
        %663 = vst [vmem:[#allocation2 + $0x70] sm:$0xff] %v647
        %664 = vst [vmem:[#allocation2 + $0x78] sm:$0xff] %v648
        %p665 = scmp.eq.s32.totalorder %s31, 1
        // Predicated region
        $region53: #{tpu_custom_call.1} parent=35 // pred_check
          %p666 = pneg %p665
        $region54: #{tpu_custom_call.1} parent=35 // pred_check_branch
          %668 = sbr.rel (%p666) target = $region56
        $region55: #{tpu_custom_call.1} parent=35 // pred_region
          %v669 = vld [vmem:[#allocation2] sm:$0xff]
          %v670 = vld [vmem:[#allocation2 + $0x8] sm:$0xff]
          %v671 = vld [vmem:[#allocation2 + $0x10] sm:$0xff]
          %v672 = vld [vmem:[#allocation2 + $0x18] sm:$0xff]
          %v673 = vld [vmem:[#allocation2 + $0x20] sm:$0xff]
          %v674 = vld [vmem:[#allocation2 + $0x28] sm:$0xff]
          %v675 = vld [vmem:[#allocation2 + $0x30] sm:$0xff]
          %v676 = vld [vmem:[#allocation2 + $0x38] sm:$0xff]
          %v677 = vld [vmem:[#allocation2 + $0x40] sm:$0xff]
          %v678 = vld [vmem:[#allocation2 + $0x48] sm:$0xff]
          %v679 = vld [vmem:[#allocation2 + $0x50] sm:$0xff]
          %v680 = vld [vmem:[#allocation2 + $0x58] sm:$0xff]
          %v681 = vld [vmem:[#allocation2 + $0x60] sm:$0xff]
          %v682 = vld [vmem:[#allocation2 + $0x68] sm:$0xff]
          %v683 = vld [vmem:[#allocation2 + $0x70] sm:$0xff]
          %v684 = vld [vmem:[#allocation2 + $0x78] sm:$0xff]
          %v685 = vld [vmem:[%s360] sm:$0x1]
          %v686 = vlaneseq
          %v687 = vshrl.u32 %v686, 7
          %v688 = vsub.s32 0, %v687
          %v689 = vrot.slane %v685, %v688
          %v690 = vmul.f32 %v669, %v689
          %v691 = vmul.f32 %v670, %v689
          %v692 = vmul.f32 %v671, %v689
          %v693 = vmul.f32 %v672, %v689
          %v694 = vmul.f32 %v673, %v689
          %v695 = vmul.f32 %v674, %v689
          %v696 = vmul.f32 %v675, %v689
          %v697 = vmul.f32 %v676, %v689
          %v698 = vmul.f32 %v677, %v689
          %v699 = vmul.f32 %v678, %v689
          %v700 = vmul.f32 %v679, %v689
          %v701 = vmul.f32 %v680, %v689
          %v702 = vmul.f32 %v681, %v689
          %v703 = vmul.f32 %v682, %v689
          %v704 = vmul.f32 %v683, %v689
          %v705 = vmul.f32 %v684, %v689
          %v706 = vld [vmem:[%s360 + $0x1] sm:$0x1]
          %v707 = vlaneseq
          %v708 = vshrl.u32 %v707, 7
          %v709 = vsub.s32 0, %v708
          %v710 = vrot.slane %v706, %v709
          %v711 = vadd.f32 %v690, %v710
          %v712 = vadd.f32 %v691, %v710
          %v713 = vadd.f32 %v692, %v710
          %v714 = vadd.f32 %v693, %v710
          %v715 = vadd.f32 %v694, %v710
          %v716 = vadd.f32 %v695, %v710
          %v717 = vadd.f32 %v696, %v710
          %v718 = vadd.f32 %v697, %v710
          %v719 = vadd.f32 %v698, %v710
          %v720 = vadd.f32 %v699, %v710
          %v721 = vadd.f32 %v700, %v710
          %v722 = vadd.f32 %v701, %v710
          %v723 = vadd.f32 %v702, %v710
          %v724 = vadd.f32 %v703, %v710
          %v725 = vadd.f32 %v704, %v710
          %v726 = vadd.f32 %v705, %v710
          %v727 = vld [vmem:[%s312] sm:$0xf]
          %v728 = vld [vmem:[%s312 + $0x4] sm:$0xf]
          %v729 = vld [vmem:[%s312 + $0x8] sm:$0xf]
          %v730 = vld [vmem:[%s312 + $0xc] sm:$0xf]
          %v731 = vld [vmem:[%s312 + $0x10] sm:$0xf]
          %v732 = vld [vmem:[%s312 + $0x14] sm:$0xf]
          %v733 = vld [vmem:[%s312 + $0x18] sm:$0xf]
          %v734 = vld [vmem:[%s312 + $0x1c] sm:$0xf]
          %v735 = vld [vmem:[%s312 + $0x20] sm:$0xf]
          %v736 = vld [vmem:[%s312 + $0x24] sm:$0xf]
          %v737 = vld [vmem:[%s312 + $0x28] sm:$0xf]
          %v738 = vld [vmem:[%s312 + $0x2c] sm:$0xf]
          %v739 = vld [vmem:[%s312 + $0x30] sm:$0xf]
          %v740 = vld [vmem:[%s312 + $0x34] sm:$0xf]
          %v741 = vld [vmem:[%s312 + $0x38] sm:$0xf]
          %v742 = vld [vmem:[%s312 + $0x3c] sm:$0xf]
          %v743 = vunpack.c.l.bf16 %v727
          %v744 = vunpack.c.l.bf16 %v728
          %v745 = vunpack.c.l.bf16 %v729
          %v746 = vunpack.c.l.bf16 %v730
          %v747 = vunpack.c.l.bf16 %v731
          %v748 = vunpack.c.l.bf16 %v732
          %v749 = vunpack.c.l.bf16 %v733
          %v750 = vunpack.c.l.bf16 %v734
          %v751 = vunpack.c.l.bf16 %v735
          %v752 = vunpack.c.l.bf16 %v736
          %v753 = vunpack.c.l.bf16 %v737
          %v754 = vunpack.c.l.bf16 %v738
          %v755 = vunpack.c.l.bf16 %v739
          %v756 = vunpack.c.l.bf16 %v740
          %v757 = vunpack.c.l.bf16 %v741
          %v758 = vunpack.c.l.bf16 %v742
          %v759 = vadd.f32 %v711, %v743
          %v760 = vadd.f32 %v712, %v744
          %v761 = vadd.f32 %v713, %v745
          %v762 = vadd.f32 %v714, %v746
          %v763 = vadd.f32 %v715, %v747
          %v764 = vadd.f32 %v716, %v748
          %v765 = vadd.f32 %v717, %v749
          %v766 = vadd.f32 %v718, %v750
          %v767 = vadd.f32 %v719, %v751
          %v768 = vadd.f32 %v720, %v752
          %v769 = vadd.f32 %v721, %v753
          %v770 = vadd.f32 %v722, %v754
          %v771 = vadd.f32 %v723, %v755
          %v772 = vadd.f32 %v724, %v756
          %v773 = vadd.f32 %v725, %v757
          %v774 = vadd.f32 %v726, %v758
          %v775 = vmax.f32 %v759, 0.0
          %v776 = vmax.f32 %v760, 0.0
          %v777 = vmax.f32 %v761, 0.0
          %v778 = vmax.f32 %v762, 0.0
          %v779 = vmax.f32 %v763, 0.0
          %v780 = vmax.f32 %v764, 0.0
          %v781 = vmax.f32 %v765, 0.0
          %v782 = vmax.f32 %v766, 0.0
          %v783 = vmax.f32 %v767, 0.0
          %v784 = vmax.f32 %v768, 0.0
          %v785 = vmax.f32 %v769, 0.0
          %v786 = vmax.f32 %v770, 0.0
          %v787 = vmax.f32 %v771, 0.0
          %v788 = vmax.f32 %v772, 0.0
          %v789 = vmax.f32 %v773, 0.0
          %v790 = vmax.f32 %v774, 0.0
          %791 = vst [vmem:[%s350] sm:$0xff] %v775
          %792 = vst [vmem:[%s350 + $0x8] sm:$0xff] %v776
          %793 = vst [vmem:[%s350 + $0x10] sm:$0xff] %v777
          %794 = vst [vmem:[%s350 + $0x18] sm:$0xff] %v778
          %795 = vst [vmem:[%s350 + $0x20] sm:$0xff] %v779
          %796 = vst [vmem:[%s350 + $0x28] sm:$0xff] %v780
          %797 = vst [vmem:[%s350 + $0x30] sm:$0xff] %v781
          %798 = vst [vmem:[%s350 + $0x38] sm:$0xff] %v782
          %799 = vst [vmem:[%s350 + $0x40] sm:$0xff] %v783
          %800 = vst [vmem:[%s350 + $0x48] sm:$0xff] %v784
          %801 = vst [vmem:[%s350 + $0x50] sm:$0xff] %v785
          %802 = vst [vmem:[%s350 + $0x58] sm:$0xff] %v786
          %803 = vst [vmem:[%s350 + $0x60] sm:$0xff] %v787
          %804 = vst [vmem:[%s350 + $0x68] sm:$0xff] %v788
          %805 = vst [vmem:[%s350 + $0x70] sm:$0xff] %v789
          %806 = vst [vmem:[%s350 + $0x78] sm:$0xff] %v790
        $region56: #{tpu_custom_call.1} parent=35 // pred_fallthru
          _
        %s807 = sand.u32 %s163, 1
        %s808 = scalar_lea.sflag [#allocation5], %s807
        %s809 = sand.u32 %s163, 1
        %s810 = smul.addr %s809, 128
        %s811 = scalar_lea.vmem [#allocation9], %s810
        // Predicated region
        $region57: #{tpu_custom_call.1} parent=35 // pred_check
          %p812 = pneg %p173
        $region58: #{tpu_custom_call.1} parent=35 // pred_check_branch
          %814 = sbr.rel (%p812) target = $region60
        $region59: #{tpu_custom_call.1} parent=35 // pred_region
          %s815 = smul.u32 16, %s29
          %s816 = ssub.s32 50, %s815
          %p817 = scmp.lt.s32.totalorder %s816, 16
          %s818 = scalar_select %p817, %s816, 16
          %s819 = smul.u32 128, %s818
          %s821 = ssub.s32 2048, %s819
          %822 = vsyncadd %s808, %s821
          %p823 = scmp.ne.s32.totalorder 0, %s819
          %s824 = smul.addr %s815, 2
          %s825 = sadd.s32 %s30, %s824
          %s826 = smul.addr %s825, 128
          %s827 = scalar_lea.hbm %s4, %s826
          %s828 = smul.u32 8, %s818
          %s829 = sshll.u32 %s811, 4
          %s830 = int_to_ptr.vmem [resolvable:$true] %s829
          %s831 = sshll.u32 %s828, 4
          %835 = dma.vmem_to_hbm [thread:$0]  (%p823), %s830, %s831, %s827, %s808, 128, 256, 8
        $region60: #{tpu_custom_call.1} parent=35 // pred_fallthru
          _
      $region36: #{tpu_custom_call.1} parent=5 // pred_fallthru
        _
      %p836 = scmp.le.s32.totalorder 2, %s19
      // Predicated region
      $region61: #{tpu_custom_call.1} parent=5 // pred_check
        %p837 = pneg %p836
      $region62: #{tpu_custom_call.1} parent=5 // pred_check_branch
        %839 = sbr.rel (%p837) target = $region64
      $region63: #{tpu_custom_call.1} parent=5 // pred_region
        %s840 = ssub.s32 %s19, 2
        // Predicated region
        $region65: #{tpu_custom_call.1} parent=63 // pred_check
          %p841 = pneg %p179
        $region66: #{tpu_custom_call.1} parent=63 // pred_check_branch
          %843 = sbr.rel (%p841) target = $region68
        $region67: #{tpu_custom_call.1} parent=63 // pred_region
          %s844 = sand.u32 %s164, 1
          %s845 = scalar_lea.sflag [#allocation5], %s844
          %s846 = sand.u32 %s164, 1
          %s847 = smul.addr %s846, 128
          %s848 = scalar_lea.vmem [#allocation9], %s847
          %849 = dma.done %s845, 2048
        $region68: #{tpu_custom_call.1} parent=63 // pred_fallthru
          _
      $region64: #{tpu_custom_call.1} parent=5 // pred_fallthru
        _
    $region6: #{tpu_custom_call.1} parent=1 // loop_footer
      %s23 = sadd.s32 1, %s19
    $region7: #{tpu_custom_call.1} parent=1 // loop_footer_branch
      %18 = sbr.rel target = $region3
    $region8: #{tpu_custom_call.1} parent=1 // loop_exit
      _
    %850 = vsyncpa [#allocation4], 1
    %s851 = scalar_lea.sflag [#allocation4], 1
    %852 = vsyncpa %s851, 1
    %853 = vsyncpa [#allocation7], 1
    %s854 = scalar_lea.sflag [#allocation7], 1
    %855 = vsyncpa %s854, 1
    %856 = vsyncpa [#allocation5], 1
    %s857 = scalar_lea.sflag [#allocation5], 1
    %858 = vsyncpa %s857, 1

</llo_original>
